<compile_context>
chip_gen: v7x
topology: tpu7x:2x2x1
jax: 0.10.0
libtpu: 0.0.40
codegen_flags: <defaults>
</compile_context>

<pallas_src>
import functools

import jax
import jax.numpy as jnp
from jax import lax
from jax.experimental import pallas as pl
from jax.experimental.pallas import tpu as pltpu

LANE = 128
ACC_ROWS = 32        # pair-loss accumulator rows -> 4 independent vadd chains
COS_ACC_ROWS = 8     # per-product accumulator rows for Cos -> 3 indep. chains
MAX_ROW_TILE = 8192  # 4 MiB f32 per input tile (sweepable 4096-8192)
TINY_ROWS = 1024     # below this many 128-lane rows: single tile, single chunk


def _round_up(x, m):
    return -(-x // m) * m


def _cdiv(a, b):
    return -(-a // b)


# ----------------------------------------------------------------------------
# Kernel 1: partial sums of |x-y| or (x-y)^2 over a (rows, 128) slab.
# Grid = (chunks [parallel], tiles_per_chunk [arbitrary, reduction]).
# Each chunk accumulates into its own (32,128) VMEM output block; the tiny
# cross-lane reduction of the partials happens outside the kernel.
# ----------------------------------------------------------------------------
def _pair_reduce_kernel(x_ref, y_ref, o_ref, *, mode, row_tile, tiles_per_chunk,
                        total_tiles, rows_valid, has_partial, has_overshoot):
    c = pl.program_id(0)
    t = pl.program_id(1)
    g = c * tiles_per_chunk + t  # global tile index

    @pl.when(t == 0)
    def _():
        o_ref[...] = jnp.zeros_like(o_ref)

    def accum(masked):
        x = x_ref[...].astype(jnp.float32)
        y = y_ref[...].astype(jnp.float32)
        d = x - y
        v = jnp.abs(d) if mode == "l1" else d * d
        if masked:
            ridx = g * row_tile + lax.broadcasted_iota(jnp.int32, v.shape, 0)
            v = jnp.where(ridx < rows_valid, v, 0.0)
        # Fold into (32,128): row_tile/32 groups -> 4 independent vadd chains.
        o_ref[...] += v.reshape(-1, ACC_ROWS, LANE).sum(axis=0)

    if not (has_partial or has_overshoot):
        accum(False)                       # unmasked fast path on every step
    else:
        last_full = total_tiles - 1 if has_partial else total_tiles

        @pl.when(g < last_full)
        def _():
            accum(False)                   # fast path for all full tiles

        if has_partial:
            @pl.when(g == total_tiles - 1)
            def _():
                accum(True)                # masked path only on the last tile
        # g >= total_tiles (overshoot step of an uneven split): skipped.


def _pair_reduce_mean(x, y, mode):
    n = x.size
    xf = x.reshape(-1)
    yf = y.reshape(-1)
    itemsize = max(jnp.dtype(x.dtype).itemsize, jnp.dtype(y.dtype).itemsize)

    rows = n // LANE
    rem = n - rows * LANE
    tail = jnp.float32(0.0)

    if rows == 0:
        # Degenerate (< 128 elements): no kernel work worth launching.
        d = xf.astype(jnp.float32) - yf.astype(jnp.float32)
        v = jnp.abs(d) if mode == "l1" else d * d
        return jnp.sum(v) / jnp.float32(n)

    if rows <= TINY_ROWS:
        # Whole input is small (< ~0.5 MiB): a tiny pad is cheaper than extra
        # code paths.  Zero padding is exact (zero diffs contribute nothing).
        rows_p = _round_up(_cdiv(n, LANE), ACC_ROWS)
        need = rows_p * LANE
        xm = jnp.pad(xf, (0, need - n)) if need != n else xf
        ym = jnp.pad(yf, (0, need - n)) if need != n else yf
        row_tile, total_tiles, n_chunks = rows_p, 1, 1
        rows_valid = None
    else:
        # Large path: never pad/copy the bulk.  A sub-128 tail (rare for
        # images) is reduced with plain jnp; the prefix slice below only
        # copies when n is not a multiple of 128.
        if rem:
            dt = xf[rows * LANE:].astype(jnp.float32) - yf[rows * LANE:].astype(jnp.float32)
            tail = jnp.sum(jnp.abs(dt) if mode == "l1" else dt * dt)
            xm = xf[:rows * LANE]
            ym = yf[:rows * LANE]
        else:
            xm, ym = xf, yf
        rows_p = rows
        # Even number of tiles (>= 2) so the 2-way chunk split is always
        # balanced and both v7x TensorCores get work.
        n_tiles_target = 2 * max(1, _cdiv(rows, 2 * MAX_ROW_TILE))
        row_tile = _round_up(_cdiv(rows, n_tiles_target), ACC_ROWS)
        total_tiles = _cdiv(rows, row_tile)
        n_chunks = 2
        rows_valid = rows if rows % row_tile else None

    tiles_per_chunk = _cdiv(total_tiles, n_chunks)
    has_partial = rows_valid is not None
    has_overshoot = n_chunks * tiles_per_chunk > total_tiles

    x2 = xm.reshape(rows_p, LANE)
    y2 = ym.reshape(rows_p, LANE)

    if has_overshoot:
        def in_idx(c, t):
            return (jnp.minimum(c * tiles_per_chunk + t, total_tiles - 1), 0)
    else:
        def in_idx(c, t):
            return (c * tiles_per_chunk + t, 0)

    out_bytes = n_chunks * ACC_ROWS * LANE * 4
    tile_bytes = row_tile * LANE * itemsize
    # 2 inputs x 2 pipeline buffers x tile + outputs + headroom.
    vmem_bytes = int(2 * 2 * tile_bytes + 2 * out_bytes + (4 << 20))
    cost = pl.CostEstimate(flops=3 * rows_p * LANE, transcendentals=0,
                           bytes_accessed=2 * rows_p * LANE * itemsize + out_bytes)

    partials = pl.pallas_call(
        functools.partial(_pair_reduce_kernel, mode=mode, row_tile=row_tile,
                          tiles_per_chunk=tiles_per_chunk,
                          total_tiles=total_tiles, rows_valid=rows_valid,
                          has_partial=has_partial, has_overshoot=has_overshoot),
        out_shape=jax.ShapeDtypeStruct((n_chunks * ACC_ROWS, LANE), jnp.float32),
        grid_spec=pltpu.PrefetchScalarGridSpec(
            num_scalar_prefetch=0,
            grid=(n_chunks, tiles_per_chunk),
            in_specs=[pl.BlockSpec((row_tile, LANE), in_idx),
                      pl.BlockSpec((row_tile, LANE), in_idx)],
            out_specs=pl.BlockSpec((ACC_ROWS, LANE), lambda c, t: (c, 0)),
        ),
        compiler_params=pltpu.CompilerParams(
            dimension_semantics=("parallel", "arbitrary"),
            vmem_limit_bytes=vmem_bytes),
        cost_estimate=cost,
    )(x2, y2)

    return (jnp.sum(partials) + tail) / jnp.float32(n)


# ----------------------------------------------------------------------------
# Kernel 2: per-sample partial sums for cosine distance.
# Grid = (batch [parallel], chunks [parallel], tiles [arbitrary, reduction]).
# Each (sample, chunk) accumulates sum(x*y), sum(x*x), sum(y*y) into a single
# (1,1,24,128) VMEM block with one read-modify-write per step.
# ----------------------------------------------------------------------------
def _cos_partials_kernel(x_ref, y_ref, o_ref, *, row_tile, tiles_per_chunk,
                         total_tiles, rows_valid, has_partial, has_overshoot):
    c = pl.program_id(1)
    t = pl.program_id(2)
    g = c * tiles_per_chunk + t

    @pl.when(t == 0)
    def _():
        o_ref[...] = jnp.zeros_like(o_ref)

    def accum(masked):
        x = x_ref[0].astype(jnp.float32)   # (row_tile, LANE)
        y = y_ref[0].astype(jnp.float32)
        if masked:
            ridx = g * row_tile + lax.broadcasted_iota(jnp.int32, x.shape, 0)
            keep = ridx < rows_valid
            x = jnp.where(keep, x, 0.0)
            y = jnp.where(keep, y, 0.0)

        def fold(p):  # (row_tile,128) -> (8,128); 3 independent add chains
            return p.reshape(-1, COS_ACC_ROWS, LANE).sum(axis=0)

        upd = jnp.concatenate([fold(x * y), fold(x * x), fold(y * y)], axis=0)
        o_ref[...] += upd[None, None]      # single block RMW of (1,1,24,128)

    if not (has_partial or has_overshoot):
        accum(False)
    else:
        last_full = total_tiles - 1 if has_partial else total_tiles

        @pl.when(g < last_full)
        def _():
            accum(False)

        if has_partial:
            @pl.when(g == total_tiles - 1)
            def _():
                accum(True)


def _cos_distance_mean(x, y):
    b = x.shape[0]
    d = x.size // b
    xf = x.reshape(b, d)
    yf = y.reshape(b, d)
    itemsize = max(jnp.dtype(x.dtype).itemsize, jnp.dtype(y.dtype).itemsize)

    rows = d // LANE
    tail_dot = tail_xx = tail_yy = None

    if rows == 0:
        xs = xf.astype(jnp.float32)
        ys = yf.astype(jnp.float32)
        dot = jnp.sum(xs * ys, -1)
        xx = jnp.sum(xs * xs, -1)
        yy = jnp.sum(ys * ys, -1)
    else:
        if rows <= TINY_ROWS:
            rows_p = _round_up(_cdiv(d, LANE), COS_ACC_ROWS)
            need = rows_p * LANE
            if need != d:  # tiny pad; zero pads contribute nothing to any sum
                xf = jnp.pad(xf, ((0, 0), (0, need - d)))
                yf = jnp.pad(yf, ((0, 0), (0, need - d)))
            row_tile, total_tiles, n_chunks = rows_p, 1, 1
            rows_valid = None
        else:
            rows_p = rows
            rem = d - rows * LANE
            if rem:  # rare: sub-128 per-sample tail reduced with plain jnp
                xt = xf[:, rows * LANE:].astype(jnp.float32)
                yt = yf[:, rows * LANE:].astype(jnp.float32)
                tail_dot = jnp.sum(xt * yt, axis=-1)
                tail_xx = jnp.sum(xt * xt, axis=-1)
                tail_yy = jnp.sum(yt * yt, axis=-1)
                xf = xf[:, :rows * LANE]
                yf = yf[:, :rows * LANE]
            n_tiles_target = 2 * max(1, _cdiv(rows, 2 * MAX_ROW_TILE))
            row_tile = _round_up(_cdiv(rows, n_tiles_target), COS_ACC_ROWS)
            total_tiles = _cdiv(rows, row_tile)
            n_chunks = 2   # 2-way tile split even for b == 1 (v7x both cores)
            rows_valid = rows if rows % row_tile else None

        tiles_per_chunk = _cdiv(total_tiles, n_chunks)
        has_partial = rows_valid is not None
        has_overshoot = n_chunks * tiles_per_chunk > total_tiles

        x3 = xf.reshape(b, rows_p, LANE)
        y3 = yf.reshape(b, rows_p, LANE)

        if has_overshoot:
            def in_idx(i, c, t):
                return (i, jnp.minimum(c * tiles_per_chunk + t, total_tiles - 1), 0)
        else:
            def in_idx(i, c, t):
                return (i, c * tiles_per_chunk + t, 0)

        acc3 = 3 * COS_ACC_ROWS
        out_bytes = b * n_chunks * acc3 * LANE * 4
        tile_bytes = row_tile * LANE * itemsize
        vmem_bytes = int(2 * 2 * tile_bytes + 4 * acc3 * LANE * 4 + (4 << 20))
        cost = pl.CostEstimate(flops=9 * b * rows_p * LANE, transcendentals=0,
                               bytes_accessed=2 * b * rows_p * LANE * itemsize
                               + out_bytes)

        partials = pl.pallas_call(
            functools.partial(_cos_partials_kernel, row_tile=row_tile,
                              tiles_per_chunk=tiles_per_chunk,
                              total_tiles=total_tiles, rows_valid=rows_valid,
                              has_partial=has_partial,
                              has_overshoot=has_overshoot),
            out_shape=jax.ShapeDtypeStruct((b, n_chunks, acc3, LANE), jnp.float32),
            grid_spec=pltpu.PrefetchScalarGridSpec(
                num_scalar_prefetch=0,
                grid=(b, n_chunks, tiles_per_chunk),
                in_specs=[pl.BlockSpec((1, row_tile, LANE), in_idx),
                          pl.BlockSpec((1, row_tile, LANE), in_idx)],
                out_specs=pl.BlockSpec((1, 1, acc3, LANE),
                                       lambda i, c, t: (i, c, 0, 0)),
            ),
            compiler_params=pltpu.CompilerParams(
                dimension_semantics=("parallel", "parallel", "arbitrary"),
                vmem_limit_bytes=vmem_bytes),
            cost_estimate=cost,
        )(x3, y3)

        sums = partials.reshape(b, n_chunks, 3, COS_ACC_ROWS, LANE).sum(axis=(1, 3, 4))
        dot, xx, yy = sums[:, 0], sums[:, 1], sums[:, 2]
        if tail_dot is not None:
            dot = dot + tail_dot
            xx = xx + tail_xx
            yy = yy + tail_yy

    eps = jnp.float32(1e-8)
    # Modern torch F.cosine_similarity semantics: clamp the norm *product*.
    cos = dot / jnp.maximum(jnp.sqrt(xx) * jnp.sqrt(yy), eps)
    return jnp.mean(1.0 - cos)


# ----------------------------------------------------------------------------
# Module wrapper
# ----------------------------------------------------------------------------
class JointLoss:
    """JAX/Pallas port of the PyTorch JointLoss module (forward pass)."""

    def __init__(self, loss_type: str = "L2", weight: float = 1.0,
                 robust: bool = False, alpha: float = 1.0, scale: float = 0.1):
        if loss_type not in ("L1", "L2", "Cos", "LPIPS"):
            raise ValueError(loss_type)
        self.loss_type = loss_type
        self.weight = float(weight)
        # robust/alpha/scale are only used on the (unimplemented) LPIPS path.
        self.robust = robust
        self.alpha = jnp.asarray([alpha], jnp.float32)
        self.scale = jnp.asarray([scale], jnp.float32)

    def __call__(self, sketch, target, train: bool = True):
        # No pre-cast to f32: the kernels widen on the VPU, so bf16 inputs
        # only move half the HBM bytes.
        sketch = jnp.asarray(sketch)
        target = jnp.asarray(target)

        if self.loss_type in ("L1", "L2"):
            mode = "l1" if self.loss_type == "L1" else "l2"
            loss = _pair_reduce_mean(sketch, target, mode)
        elif self.loss_type == "Cos":
            # TODO(synk): cos_distance is external; assumed to be
            # mean_b (1 - cosine_similarity(x_b.flatten(), y_b.flatten())).
            loss = _cos_distance_mean(sketch, target)
        else:
            # TODO(synk): LPIPS requires a pretrained perceptual network
            # (external LPIPS class + checkpoint); not reproducible in-script.
            raise NotImplementedError("LPIPS loss is not translatable here.")

        return self.weight * loss


if __name__ == "__main__":
    key = jax.random.PRNGKey(0)
    k1, k2, k3, k4 = jax.random.split(key, 4)

    # NCHW images, batch=2, channels=3, 16x16 spatial (tiny single-tile path).
    sketch = jax.random.uniform(k1, (2, 3, 16, 16), jnp.float32)
    target = jax.random.uniform(k2, (2, 3, 16, 16), jnp.float32)

    # L2 (mse_loss)
    l2 = JointLoss(loss_type="L2", weight=1.0)(sketch, target)
    jax.block_until_ready(l2)
    ref_l2 = jnp.mean((sketch - target) ** 2)
    assert jnp.allclose(l2, ref_l2, rtol=1e-4, atol=1e-6), (l2, ref_l2)

    # L1 (l1_loss)
    l1 = JointLoss(loss_type="L1", weight=0.5)(sketch, target)
    jax.block_until_ready(l1)
    ref_l1 = 0.5 * jnp.mean(jnp.abs(sketch - target))
    assert jnp.allclose(l1, ref_l1, rtol=1e-4, atol=1e-6), (l1, ref_l1)

    # Cos (assumed cosine-distance semantics)
    lc = JointLoss(loss_type="Cos", weight=1.0)(sketch, target)
    jax.block_until_ready(lc)
    xs = sketch.reshape(2, -1)
    ys = target.reshape(2, -1)
    eps = 1e-8
    ref_cos = jnp.mean(
        1.0 - jnp.sum(xs * ys, -1)
        / jnp.maximum(jnp.linalg.norm(xs, axis=-1)
                      * jnp.linalg.norm(ys, axis=-1), eps))
    assert jnp.allclose(lc, ref_cos, rtol=1e-4, atol=1e-6), (lc, ref_cos)

    # Larger shape: exercises the 2-chunk multi-tile path + last-tile mask.
    big_s = jax.random.uniform(k3, (2, 3, 160, 160), jnp.float32)
    big_t = jax.random.uniform(k4, (2, 3, 160, 160), jnp.float32)
    lb = JointLoss(loss_type="L2", weight=1.0)(big_s, big_t)
    jax.block_until_ready(lb)
    ref_lb = jnp.mean((big_s - big_t) ** 2)
    assert jnp.allclose(lb, ref_lb, rtol=1e-4, atol=1e-6), (lb, ref_lb)

    # Cos on batch=1 with a larger per-sample size: exercises the 2-way tile
    # split of the Cos kernel even when the batch axis cannot be split.
    cb_s = jax.random.uniform(k3, (1, 3, 224, 224), jnp.float32)
    cb_t = jax.random.uniform(k4, (1, 3, 224, 224), jnp.float32)
    lcb = JointLoss(loss_type="Cos", weight=1.0)(cb_s, cb_t)
    jax.block_until_ready(lcb)
    xs1 = cb_s.reshape(1, -1)
    ys1 = cb_t.reshape(1, -1)
    ref_lcb = jnp.mean(
        1.0 - jnp.sum(xs1 * ys1, -1)
        / jnp.maximum(jnp.linalg.norm(xs1, axis=-1)
                      * jnp.linalg.norm(ys1, axis=-1), eps))
    assert jnp.allclose(lcb, ref_lcb, rtol=1e-4, atol=1e-6), (lcb, ref_lcb)

    # Non-128-multiple element count: exercises the tiny pad / tail handling.
    odd_s = jax.random.uniform(k3, (2, 3, 17, 17), jnp.float32)
    odd_t = jax.random.uniform(k4, (2, 3, 17, 17), jnp.float32)
    lo = JointLoss(loss_type="L1", weight=1.0)(odd_s, odd_t)
    jax.block_until_ready(lo)
    ref_lo = jnp.mean(jnp.abs(odd_s - odd_t))
    assert jnp.allclose(lo, ref_lo, rtol=1e-4, atol=1e-6), (lo, ref_lo)

    print("KERNEL_OK")
</pallas_src>

<mosaic_0001>
module attributes {stable_mosaic.version = 11 : i64} {
  func.func @_pair_reduce_kernel(%arg0: i32, %arg1: i32, %arg2: memref<32x128xf32, #tpu.memory_space<vmem>>, %arg3: memref<32x128xf32, #tpu.memory_space<vmem>>, %arg4: memref<32x128xf32, #tpu.memory_space<vmem>>) attributes {dimension_semantics = [#tpu.dimension_semantics<parallel>, #tpu.dimension_semantics<arbitrary>], iteration_bounds = array<i64: 1, 1>, scalar_prefetch = 0 : i64, scratch_operands = 0 : i64, tpu.core_type = #tpu.core_type<tc>, window_params = [{transform_indices = @transform_0, window_bounds = array<i64: 32, 128>}, {transform_indices = @transform_1, window_bounds = array<i64: 32, 128>}, {transform_indices = @transform_2, window_bounds = array<i64: 32, 128>}]} {
    %c0_i32 = arith.constant 0 : i32
    %0 = arith.cmpi eq, %arg1, %c0_i32 : i32
    %1 = arith.extui %0 : i1 to i32
    %c0_i32_0 = arith.constant 0 : i32
    %2 = arith.cmpi ne, %1, %c0_i32_0 : i32
    scf.if %2 {
      %cst_8 = arith.constant 0.000000e+00 : f32
      %12 = vector.broadcast %cst_8 : f32 to vector<32x128xf32>
      %c0_9 = arith.constant 0 : index
      %c0_10 = arith.constant 0 : index
      %13 = vector.load %arg4[%c0_9, %c0_10] : memref<32x128xf32, #tpu.memory_space<vmem>>, vector<32x128xf32>
      tpu.vector_store %arg4[%c0_9, %c0_10], %12 {strides = array<i32>} : memref<32x128xf32, #tpu.memory_space<vmem>>, vector<32x128xf32>,
    } else {
    }
    %c0 = arith.constant 0 : index
    %c0_1 = arith.constant 0 : index
    %3 = vector.load %arg2[%c0, %c0_1] : memref<32x128xf32, #tpu.memory_space<vmem>>, vector<32x128xf32>
    %c0_2 = arith.constant 0 : index
    %c0_3 = arith.constant 0 : index
    %4 = vector.load %arg3[%c0_2, %c0_3] : memref<32x128xf32, #tpu.memory_space<vmem>>, vector<32x128xf32>
    %5 = arith.subf %3, %4 : vector<32x128xf32>
    %6 = arith.mulf %5, %5 : vector<32x128xf32>
    %c0_4 = arith.constant 0 : index
    %c0_5 = arith.constant 0 : index
    %7 = vector.load %arg4[%c0_4, %c0_5] : memref<32x128xf32, #tpu.memory_space<vmem>>, vector<32x128xf32>
    %8 = vector.shape_cast %6 : vector<32x128xf32> to vector<1x32x128xf32>
    %cst = arith.constant dense<0.000000e+00> : vector<32x128xf32>
    %9 = vector.multi_reduction <add>, %8, %cst [0] : vector<1x32x128xf32> to vector<32x128xf32>
    %10 = arith.addf %7, %9 : vector<32x128xf32>
    %c0_6 = arith.constant 0 : index
    %c0_7 = arith.constant 0 : index
    %11 = vector.load %arg4[%c0_6, %c0_7] : memref<32x128xf32, #tpu.memory_space<vmem>>, vector<32x128xf32>
    tpu.vector_store %arg4[%c0_6, %c0_7], %10 {strides = array<i32>} : memref<32x128xf32, #tpu.memory_space<vmem>>, vector<32x128xf32>,
    return
  }
  func.func @transform_0(%arg0: i32, %arg1: i32) -> (i32, i32) {
    %c1_i32 = arith.constant 1 : i32
    %0 = arith.muli %arg0, %c1_i32 : i32
    %1 = arith.addi %0, %arg1 : i32
    %c0_i32 = arith.constant 0 : i32
    %c0_i32_0 = arith.constant 0 : i32
    return %1, %c0_i32 : i32, i32
  }
  func.func @transform_1(%arg0: i32, %arg1: i32) -> (i32, i32) {
    %c1_i32 = arith.constant 1 : i32
    %0 = arith.muli %arg0, %c1_i32 : i32
    %1 = arith.addi %0, %arg1 : i32
    %c0_i32 = arith.constant 0 : i32
    %c0_i32_0 = arith.constant 0 : i32
    return %1, %c0_i32 : i32, i32
  }
  func.func @transform_2(%arg0: i32, %arg1: i32) -> (i32, i32) {
    %c0_i32 = arith.constant 0 : i32
    %c0_i32_0 = arith.constant 0 : i32
    return %arg0, %c0_i32 : i32, i32
  }
}

</mosaic_0001>

<llo_original>
// kernel: tpu_custom_call.1
$region0: #{tpu_custom_call.1}
  #allocation0 [shape = 'u32[]', space=smem, size = 0x4, offset = 0x4, fixed_abs, tag = 'smem constant byte address 0x4 - core index']
  #allocation1 [shape = 'u32[144,128]{1,0:T(1,128)}', space=vmem, size = 0x12000, scoped, tag = 'internal scratch']
  %s0 = inlined_call_operand.hbm [shape: f32[32,128], index: 0, kind: input, shape index: {}]
  %s1 = inlined_call_operand.hbm [shape: f32[32,128], index: 1, kind: input, shape index: {}]
  %s2 = inlined_call_operand.hbm [shape: f32[32,128], index: 2, kind: output, shape index: {}]
  %s3 = sld [smem:[#allocation0]]
  $region30: #{tpu_custom_call.1} parent=0
    _
  %s5 = ssub.s32 1, %s3
  %s6 = scalar_select 0, %s5, %s3
  $region1: #{tpu_custom_call.1} parent=0
    #allocation2 [shape = 'u8[16384]{0}', space=vmem, size = 0x4000, scoped, tag = 'input window, operand 0, single buffered']
    #allocation3 [shape = 's32[1]{0}', space=sflag, size = 0x4, scoped, tag = 'scoped memory for tpu_custom_call.1']
    #allocation4 [shape = 's32[1]{0}', space=sflag, size = 0x4, scoped, tag = 'scoped memory for tpu_custom_call.1']
    #allocation5 [shape = 'u8[16384]{0}', space=vmem, size = 0x4000, scoped, tag = 'input window, operand 1, single buffered']
    #allocation6 [shape = 's32[1]{0}', space=sflag, size = 0x4, scoped, tag = 'scoped memory for tpu_custom_call.1']
    #allocation7 [shape = 'u8[16384]{0}', space=vmem, size = 0x4000, scoped, tag = 'output window, operand 0, single buffered']
    %7 = vsyncpa [#allocation3], 0
    %8 = vsyncpa [#allocation6], 0
    %9 = vsyncpa [#allocation4], 0
    // Predicated region
    $region2: #{tpu_custom_call.1} parent=1 // pred_check
      _
    $region3: #{tpu_custom_call.1} parent=1 // pred_check_branch
      %11 = sbr.rel (0) target = $region5
    $region4: #{tpu_custom_call.1} parent=1 // pred_region
      %s12 = sadd.s32 0, 0
      %s13 = smul.u32 4, %s12
      %s15 = ssub.s32 512, 512
      %16 = vsyncadd [#allocation3], %s15
      %s17 = smul.addr %s13, 128
      %s18 = scalar_lea.hbm %s0, %s17
      %s19 = sshll.u32 [#allocation2], 4
      %s20 = int_to_ptr.vmem [resolvable:$true] %s19
      %25 = dma.hbm_to_vmem [thread:$0]  %s18, 512, %s20, [#allocation3], 128, 128, 8
    $region5: #{tpu_custom_call.1} parent=1 // pred_fallthru
      _
    // Predicated region
    $region6: #{tpu_custom_call.1} parent=1 // pred_check
      _
    $region7: #{tpu_custom_call.1} parent=1 // pred_check_branch
      %27 = sbr.rel (0) target = $region9
    $region8: #{tpu_custom_call.1} parent=1 // pred_region
      %s28 = sadd.s32 0, 0
      %s29 = smul.u32 4, %s28
      %s31 = ssub.s32 512, 512
      %32 = vsyncadd [#allocation6], %s31
      %s33 = smul.addr %s29, 128
      %s34 = scalar_lea.hbm %s1, %s33
      %s35 = sshll.u32 [#allocation5], 4
      %s36 = int_to_ptr.vmem [resolvable:$true] %s35
      %41 = dma.hbm_to_vmem [thread:$0]  %s34, 512, %s36, [#allocation6], 128, 128, 8
    $region9: #{tpu_custom_call.1} parent=1 // pred_fallthru
      _
    // Predicated region
    $region10: #{tpu_custom_call.1} parent=1 // pred_check
      _
    $region11: #{tpu_custom_call.1} parent=1 // pred_check_branch
      %43 = sbr.rel (0) target = $region13
    $region12: #{tpu_custom_call.1} parent=1 // pred_region
      %44 = dma.done [#allocation3], 512
    $region13: #{tpu_custom_call.1} parent=1 // pred_fallthru
      _
    // Predicated region
    $region14: #{tpu_custom_call.1} parent=1 // pred_check
      _
    $region15: #{tpu_custom_call.1} parent=1 // pred_check_branch
      %46 = sbr.rel (0) target = $region17
    $region16: #{tpu_custom_call.1} parent=1 // pred_region
      %47 = dma.done [#allocation6], 512
    $region17: #{tpu_custom_call.1} parent=1 // pred_fallthru
      _
    %s48 = sadd.s32 0, 0
    %s49 = smul.u32 4, %s48
    %s50 = sadd.s32 0, 0
    %s51 = smul.u32 4, %s50
    %p52 = scmp.eq.s32.totalorder 0, 0
    // Predicated region
    $region18: #{tpu_custom_call.1} parent=1 // pred_check
      %p53 = pneg %p52
    $region19: #{tpu_custom_call.1} parent=1 // pred_check_branch
      %55 = sbr.rel (%p53) target = $region21
    $region20: #{tpu_custom_call.1} parent=1 // pred_region
      %56 = vst [vmem:[#allocation7] sm:$0xff] 0.0
      %57 = vst [vmem:[#allocation7 + $0x8] sm:$0xff] 0.0
      %58 = vst [vmem:[#allocation7 + $0x10] sm:$0xff] 0.0
      %59 = vst [vmem:[#allocation7 + $0x18] sm:$0xff] 0.0
    $region21: #{tpu_custom_call.1} parent=1 // pred_fallthru
      _
    %v60 = vld [vmem:[#allocation2] sm:$0xff]
    %v61 = vld [vmem:[#allocation2 + $0x8] sm:$0xff]
    %v62 = vld [vmem:[#allocation2 + $0x10] sm:$0xff]
    %v63 = vld [vmem:[#allocation2 + $0x18] sm:$0xff]
    %v64 = vld [vmem:[#allocation5] sm:$0xff]
    %v65 = vld [vmem:[#allocation5 + $0x8] sm:$0xff]
    %v66 = vld [vmem:[#allocation5 + $0x10] sm:$0xff]
    %v67 = vld [vmem:[#allocation5 + $0x18] sm:$0xff]
    %v68 = vsub.f32 %v60, %v64
    %v69 = vsub.f32 %v61, %v65
    %v70 = vsub.f32 %v62, %v66
    %v71 = vsub.f32 %v63, %v67
    %v72 = vmul.f32 %v68, %v68
    %v73 = vmul.f32 %v69, %v69
    %v74 = vmul.f32 %v70, %v70
    %v75 = vmul.f32 %v71, %v71
    %v76 = vld [vmem:[#allocation7] sm:$0xff]
    %v77 = vld [vmem:[#allocation7 + $0x8] sm:$0xff]
    %v78 = vld [vmem:[#allocation7 + $0x10] sm:$0xff]
    %v79 = vld [vmem:[#allocation7 + $0x18] sm:$0xff]
    %v80 = vadd.f32 %v72, 0.0
    %v81 = vadd.f32 %v73, 0.0
    %v82 = vadd.f32 %v74, 0.0
    %v83 = vadd.f32 %v75, 0.0
    %v84 = vadd.f32 %v76, %v80
    %v85 = vadd.f32 %v77, %v81
    %v86 = vadd.f32 %v78, %v82
    %v87 = vadd.f32 %v79, %v83
    %88 = vst [vmem:[#allocation7] sm:$0xff] %v84
    %89 = vst [vmem:[#allocation7 + $0x8] sm:$0xff] %v85
    %90 = vst [vmem:[#allocation7 + $0x10] sm:$0xff] %v86
    %91 = vst [vmem:[#allocation7 + $0x18] sm:$0xff] %v87
    // Predicated region
    $region22: #{tpu_custom_call.1} parent=1 // pred_check
      _
    $region23: #{tpu_custom_call.1} parent=1 // pred_check_branch
      %93 = sbr.rel (0) target = $region25
    $region24: #{tpu_custom_call.1} parent=1 // pred_region
      %s95 = ssub.s32 512, 512
      %96 = vsyncadd [#allocation4], %s95
      %s97 = sshll.u32 [#allocation7], 4
      %s98 = int_to_ptr.vmem [resolvable:$true] %s97
      %103 = dma.vmem_to_hbm [thread:$0]  %s98, 512, %s2, [#allocation4], 128, 128, 8
    $region25: #{tpu_custom_call.1} parent=1 // pred_fallthru
      _
    // Predicated region
    $region26: #{tpu_custom_call.1} parent=1 // pred_check
      _
    $region27: #{tpu_custom_call.1} parent=1 // pred_check_branch
      %105 = sbr.rel (0) target = $region29
    $region28: #{tpu_custom_call.1} parent=1 // pred_region
      %106 = dma.done [#allocation4], 512
    $region29: #{tpu_custom_call.1} parent=1 // pred_fallthru
      _
    %107 = vsyncpa [#allocation3], 1
    %108 = vsyncpa [#allocation6], 1
    %109 = vsyncpa [#allocation4], 1

</llo_original>
